<compile_context>
chip_gen: v7x
topology: tpu7x:2x2x1
jax: 0.10.0
libtpu: 0.0.40
codegen_flags: <defaults>
</compile_context>

<pallas_src>
import functools
import math

import jax
import jax.numpy as jnp
from jax.experimental import pallas as pl
from jax.experimental.pallas import tpu as pltpu


# ----------------------------- Pallas kernel -------------------------------

def value_kernel(x_ref, wt_ref, o_ref):
    """Bias-free linear: (M, dim_input) @ (dim_input, dim_val).

    x_ref:  (M, dim_input)      activations (rows = flattened leading dims)
    wt_ref: (dim_input, dim_val) pre-transposed weight
    o_ref:  (M, dim_val)
    """
    o_ref[...] = jnp.dot(
        x_ref[...], wt_ref[...], preferred_element_type=jnp.float32
    ).astype(o_ref.dtype)


# ----------------------------- wrapper --------------------------------------

@jax.jit
def value_forward(x, w_t):
    """x: (..., dim_input), w_t: (dim_input, dim_val) pre-transposed weight."""
    *lead, dim_input = x.shape
    dim_val = w_t.shape[-1]
    x2 = x.reshape(-1, dim_input)                      # flatten leading dims
    vmem = pl.BlockSpec(memory_space=pltpu.MemorySpace.VMEM)
    out = pl.pallas_call(
        value_kernel,
        out_shape=jax.ShapeDtypeStruct((x2.shape[0], dim_val), x.dtype),
        in_specs=[vmem, vmem],
        out_specs=vmem,
    )(x2, w_t)
    return out.reshape(*lead, dim_val)


def make_value_params(key, dim_input, dim_val, dtype=jnp.float32):
    """Build params. Weight is created in PyTorch layout (dim_val, dim_input)
    and pre-transposed once here so the forward never transposes it."""
    bound = 1.0 / math.sqrt(dim_input)                 # nn.Linear default init range
    w = jax.random.uniform(key, (dim_val, dim_input), dtype=dtype,
                           minval=-bound, maxval=bound)
    return {"w": w, "w_t": jnp.asarray(w.T)}           # (dim_input, dim_val)


# ----------------------------- pure-JAX reference ----------------------------

def value_reference(x, w):
    # PyTorch: F.linear(x, w) == x @ w.T, no bias.
    return jnp.einsum("...i,oi->...o", x, w)


# ----------------------------------- main -----------------------------------

if __name__ == "__main__":
    # Small shapes consistent with the module: (batch, seq, dim_input) -> dim_val.
    B, S, DIM_INPUT, DIM_VAL = 2, 8, 32, 128

    key = jax.random.PRNGKey(0)
    kx, kw = jax.random.split(key, 2)

    x = jax.random.normal(kx, (B, S, DIM_INPUT), dtype=jnp.float32)
    params = make_value_params(kw, DIM_INPUT, DIM_VAL)

    out = value_forward(x, params["w_t"])
    out = jax.block_until_ready(out)

    ref = value_reference(x, params["w"])
    if out.shape != (B, S, DIM_VAL):
        raise AssertionError(f"bad output shape {out.shape}")
    if not jnp.allclose(out, ref, rtol=1e-5, atol=1e-5):
        raise AssertionError("Pallas output does not match reference")

    print("KERNEL_OK")
</pallas_src>

<mosaic_0001>
module attributes {stable_mosaic.version = 11 : i64} {
  func.func @value_kernel(%arg0: memref<16x32xf32, #tpu.memory_space<vmem>>, %arg1: memref<32x128xf32, #tpu.memory_space<vmem>>, %arg2: memref<16x128xf32, #tpu.memory_space<vmem>>) attributes {dimension_semantics = [], scalar_prefetch = 0 : i64, scratch_operands = 0 : i64, tpu.core_type = #tpu.core_type<tc>} {
    %c0 = arith.constant 0 : index
    %c0_0 = arith.constant 0 : index
    %0 = vector.load %arg0[%c0, %c0_0] : memref<16x32xf32, #tpu.memory_space<vmem>>, vector<16x32xf32>
    %c0_1 = arith.constant 0 : index
    %c0_2 = arith.constant 0 : index
    %1 = vector.load %arg1[%c0_1, %c0_2] : memref<32x128xf32, #tpu.memory_space<vmem>>, vector<32x128xf32>
    %cst = arith.constant dense<0.000000e+00> : vector<16x128xf32>
    %2 = tpu.matmul %0, %1, %cst {dimension_numbers = #tpu.dot_dimension_numbers<[1], [0], [0], [1], [0, 0, 1, 1], [], []>} : vector<16x32xf32>, vector<32x128xf32>, vector<16x128xf32> -> vector<16x128xf32>
    %c0_3 = arith.constant 0 : index
    %c0_4 = arith.constant 0 : index
    %3 = vector.load %arg2[%c0_3, %c0_4] : memref<16x128xf32, #tpu.memory_space<vmem>>, vector<16x128xf32>
    tpu.vector_store %arg2[%c0_3, %c0_4], %2 {strides = array<i32>} : memref<16x128xf32, #tpu.memory_space<vmem>>, vector<16x128xf32>,
    return
  }
}

</mosaic_0001>

<llo_original>
// kernel: value_forward.1
$region0: #{value_forward.1}
  #allocation0 [shape = 'u32[]', space=smem, size = 0x4, offset = 0x4, fixed_abs, tag = 'smem constant byte address 0x4 - core index']
  #allocation1 [shape = 'u32[144,128]{1,0:T(1,128)}', space=vmem, size = 0x12000, scoped, tag = 'internal scratch']
  %s0 = inlined_call_operand.hbm [shape: f32[16,32], index: 0, kind: input, shape index: {}]
  %s1 = inlined_call_operand.hbm [shape: f32[32,128], index: 1, kind: input, shape index: {}]
  %s2 = inlined_call_operand.hbm [shape: f32[16,128], index: 2, kind: output, shape index: {}]
  %s3 = sld [smem:[#allocation0]]
  $region26: #{value_forward.1} parent=0
    _
  %s5 = ssub.s32 1, %s3
  %s6 = scalar_select 0, %s5, %s3
  $region1: #{value_forward.1} parent=0
    #allocation2 [shape = 'u8[8192]{0}', space=vmem, size = 0x2000, scoped, tag = 'input window, operand 0, single buffered']
    #allocation3 [shape = 's32[1]{0}', space=sflag, size = 0x4, scoped, tag = 'scoped memory for value_forward.1']
    #allocation4 [shape = 's32[1]{0}', space=sflag, size = 0x4, scoped, tag = 'scoped memory for value_forward.1']
    #allocation5 [shape = 'u8[16384]{0}', space=vmem, size = 0x4000, scoped, tag = 'input window, operand 1, single buffered']
    #allocation6 [shape = 's32[1]{0}', space=sflag, size = 0x4, scoped, tag = 'scoped memory for value_forward.1']
    #allocation7 [shape = 'u8[8192]{0}', space=vmem, size = 0x2000, scoped, tag = 'output window, operand 0, single buffered']
    %7 = vsyncpa [#allocation3], 0
    %8 = vsyncpa [#allocation6], 0
    %9 = vsyncpa [#allocation4], 0
    // Predicated region
    $region2: #{value_forward.1} parent=1 // pred_check
      _
    $region3: #{value_forward.1} parent=1 // pred_check_branch
      %11 = sbr.rel (0) target = $region5
    $region4: #{value_forward.1} parent=1 // pred_region
      %s13 = ssub.s32 256, 256
      %14 = vsyncadd [#allocation3], %s13
      %s15 = sshll.u32 [#allocation2], 4
      %s16 = int_to_ptr.vmem [resolvable:$true] %s15
      %21 = dma.hbm_to_vmem [thread:$0]  %s0, 256, %s16, [#allocation3], 128, 128, 8
    $region5: #{value_forward.1} parent=1 // pred_fallthru
      _
    // Predicated region
    $region6: #{value_forward.1} parent=1 // pred_check
      _
    $region7: #{value_forward.1} parent=1 // pred_check_branch
      %23 = sbr.rel (0) target = $region9
    $region8: #{value_forward.1} parent=1 // pred_region
      %s25 = ssub.s32 512, 512
      %26 = vsyncadd [#allocation6], %s25
      %s27 = sshll.u32 [#allocation5], 4
      %s28 = int_to_ptr.vmem [resolvable:$true] %s27
      %33 = dma.hbm_to_vmem [thread:$0]  %s1, 512, %s28, [#allocation6], 128, 128, 8
    $region9: #{value_forward.1} parent=1 // pred_fallthru
      _
    // Predicated region
    $region10: #{value_forward.1} parent=1 // pred_check
      _
    $region11: #{value_forward.1} parent=1 // pred_check_branch
      %35 = sbr.rel (0) target = $region13
    $region12: #{value_forward.1} parent=1 // pred_region
      %36 = dma.done [#allocation3], 256
    $region13: #{value_forward.1} parent=1 // pred_fallthru
      _
    // Predicated region
    $region14: #{value_forward.1} parent=1 // pred_check
      _
    $region15: #{value_forward.1} parent=1 // pred_check_branch
      %38 = sbr.rel (0) target = $region17
    $region16: #{value_forward.1} parent=1 // pred_region
      %39 = dma.done [#allocation6], 512
    $region17: #{value_forward.1} parent=1 // pred_fallthru
      _
    %v40 = vld [vmem:[#allocation2] sm:$0xff]
    %v41 = vld [vmem:[#allocation2 + $0x8] sm:$0xff]
    %v42 = vld [vmem:[#allocation5] sm:$0xff]
    %v43 = vld [vmem:[#allocation5 + $0x8] sm:$0xff]
    %v44 = vld [vmem:[#allocation5 + $0x10] sm:$0xff]
    %v45 = vld [vmem:[#allocation5 + $0x18] sm:$0xff]
    %vm46 = vcmask 261120
    %v48 = vsel %vm46, %v40, 0
    %v51 = vsel %vm46, %v41, 0
    %53 = vmatprep.subr.mxu0 0.0
    %54 = vmatpush1.msra.mxu0 %v42
    %55 = vmatprep.subr.mxu0 0.0
    %56 = vmatpush1.msra.mxu0 %v43
    %57 = vmatprep.subr.mxu0 0.0
    %58 = vmatpush1.msra.mxu0 %v44
    %59 = vmatprep.subr.mxu0 0.0
    %60 = vmatpush1.msra.mxu0 %v45
    %61 = vmatprep.subr.mxu0 0.0
    %62 = vmatpush1.msra.mxu0 0.0
    %63 = vmatprep.subr.mxu0 0.0
    %64 = vmatpush1.msra.mxu0 0.0
    %65 = vmatprep.subr.mxu0 0.0
    %66 = vmatpush1.msra.mxu0 0.0
    %67 = vmatprep.subr.mxu0 0.0
    %68 = vmatpush1.msra.mxu0 0.0
    %69 = vmatprep.subr.mxu0 0.0
    %70 = vmatpush1.msra.mxu0 0.0
    %71 = vmatprep.subr.mxu0 0.0
    %72 = vmatpush1.msra.mxu0 0.0
    %73 = vmatprep.subr.mxu0 0.0
    %74 = vmatpush1.msra.mxu0 0.0
    %75 = vmatprep.subr.mxu0 0.0
    %76 = vmatpush1.msra.mxu0 0.0
    %77 = vmatprep.subr.mxu0 0.0
    %78 = vmatpush1.msra.mxu0 0.0
    %79 = vmatprep.subr.mxu0 0.0
    %80 = vmatpush1.msra.mxu0 0.0
    %81 = vmatprep.subr.mxu0 0.0
    %82 = vmatpush1.msra.mxu0 0.0
    %83 = vmatprep.subr.mxu0 0.0
    %84 = vmatpush1.msra.mxu0 0.0
    %85 = vmatprep.subr.mxu0 0.0
    %86 = vmatpush1.msra.mxu0 0.0
    %87 = vmatprep.subr.mxu0 0.0
    %88 = vmatpush1.msra.mxu0 0.0
    %89 = vmatprep.subr.mxu0 0.0
    %90 = vmatpush1.msra.mxu0 0.0
    %91 = vmatprep.subr.mxu0 0.0
    %92 = vmatpush1.msra.mxu0 0.0
    %93 = vmatprep.subr.mxu0 0.0
    %94 = vmatpush1.msra.mxu0 0.0
    %95 = vmatprep.subr.mxu0 0.0
    %96 = vmatpush1.msra.mxu0 0.0
    %97 = vmatprep.subr.mxu0 0.0
    %98 = vmatpush1.msra.mxu0 0.0
    %99 = vmatprep.subr.mxu0 0.0
    %100 = vmatpush1.msra.mxu0 0.0
    %101 = vmatprep.subr.mxu0 0.0
    %102 = vmatpush1.msra.mxu0 0.0
    %103 = vmatprep.subr.mxu0 0.0
    %104 = vmatpush1.msra.mxu0 0.0
    %105 = vmatprep.subr.mxu0 0.0
    %106 = vmatpush1.msra.mxu0 0.0
    %107 = vmatprep.subr.mxu0 0.0
    %108 = vmatpush1.msra.mxu0 0.0
    %109 = vmatprep.subr.mxu0 0.0
    %110 = vmatpush1.msra.mxu0 0.0
    %111 = vmatprep.subr.mxu0 0.0
    %112 = vmatpush1.msra.mxu0 0.0
    %113 = vmatprep.subr.mxu0 0.0
    %114 = vmatpush1.msra.mxu0 0.0
    %115 = vmatprep.subr.mxu0 0.0
    %116 = vmatpush1.msra.mxu0 0.0
    %117 = vmatprep.mubr.f32.mxu0 0.0
    %118 = vmatmul.mubr.f32.gmra.mrb[0].mxu0 %v48
    %v119 = vpop.f32.mrb[0].mxu0
    %v120 = vadd.f32 0.0, %v119
    %v121 = vpop.f32.mrb[0].mxu0
    %122 = vmatprep.mubr.f32.mxu0 0.0
    %123 = vmatmul.mubr.f32.gmra.mrb[0].mxu0 %v51
    %v124 = vpop.f32.mrb[0].mxu0
    %v125 = vadd.f32 0.0, %v124
    %v126 = vpop.f32.mrb[0].mxu0
    %127 = vdwg.mxu0
    %128 = vst [vmem:[#allocation7] sm:$0xff] %v120
    %129 = vst [vmem:[#allocation7 + $0x8] sm:$0xff] %v125
    // Predicated region
    $region18: #{value_forward.1} parent=1 // pred_check
      _
    $region19: #{value_forward.1} parent=1 // pred_check_branch
      %131 = sbr.rel (0) target = $region21
    $region20: #{value_forward.1} parent=1 // pred_region
      %s133 = ssub.s32 256, 256
      %134 = vsyncadd [#allocation4], %s133
      %s135 = sshll.u32 [#allocation7], 4
      %s136 = int_to_ptr.vmem [resolvable:$true] %s135
      %141 = dma.vmem_to_hbm [thread:$0]  %s136, 256, %s2, [#allocation4], 128, 128, 8
    $region21: #{value_forward.1} parent=1 // pred_fallthru
      _
    // Predicated region
    $region22: #{value_forward.1} parent=1 // pred_check
      _
    $region23: #{value_forward.1} parent=1 // pred_check_branch
      %143 = sbr.rel (0) target = $region25
    $region24: #{value_forward.1} parent=1 // pred_region
      %144 = dma.done [#allocation4], 256
    $region25: #{value_forward.1} parent=1 // pred_fallthru
      _
    %145 = vsyncpa [#allocation3], 1
    %146 = vsyncpa [#allocation6], 1
    %147 = vsyncpa [#allocation4], 1

</llo_original>
